<compile_context>
chip_gen: v6e
topology: v6e:2x2x1
jax: 0.10.0
libtpu: 0.0.40
codegen_flags: <defaults>
</compile_context>

<pallas_src>
import functools
import numpy as np
import jax
import jax.numpy as jnp
from jax import lax
from jax.experimental import pallas as pl
from jax.experimental.pallas import tpu as pltpu

# Global sizes implied by the module's globals (small, deterministic choices).
SEQ_LEN = 8          # seq_length
INPUT_LEN = 16       # input_length
TGT_LEN = 4          # tgt_length
NHIDDEN = 32
NLAYERS = 2
NARCHS = 18          # init_paras() table has 18 rows
NPARAS = 2
NPARAHIDDEN = 16

OUT_DIM = NARCHS * TGT_LEN                    # 72
OUT_PAD = -(-OUT_DIM // 128) * 128            # 128 (lane-dense head output)


def _round_up(v, m):
    return -(-v // m) * m


# ----------------------------------------------------------------------------
# Fused kernel: 2-layer LSTM (PyTorch gate order i,f,g,o) + relu + head matmul.
#
# x_ref     : (T*TB, F)   bf16, time-major within the batch tile (row = t*TB + b)
# wih*_ref  : (in, 4H)    bf16, pre-transposed; i/f/o columns pre-scaled by 0.5
# whh*_ref  : (H, 4H)     bf16, pre-transposed; i/f/o columns pre-scaled by 0.5
# b*_ref    : (1, 4H)     f32 combined bias (b_ih + b_hh), i/f/o entries * 0.5
# urep_ref  : (H, 128)    bf16, precomputed uarch_rep^T zero-padded to 128 lanes
# out_ref   : (TB, 128)   f32
# gx_ref    : (T*TB, 4H)  f32 scratch, x-side gate pre-activations (reused per layer)
# h1_ref    : (T*TB, H)   f32 scratch, layer-1 hidden sequence (layer-2 input)
# h_sc,c_sc : (TB, H)     f32 scratch, recurrent state (bounded live ranges)
# ----------------------------------------------------------------------------
def _fused_lstm_dse_kernel(x_ref, wih1_ref, whh1_ref, b1_ref,
                           wih2_ref, whh2_ref, b2_ref, urep_ref,
                           out_ref, gx_ref, h1_ref, h_sc, c_sc,
                           *, tile_b, seq_len, nhidden):
    H = nhidden
    TB = tile_b
    T = seq_len
    f32 = jnp.float32
    bf16 = jnp.bfloat16

    def run_layer(whh, write_seq):
        # whh: (H, 4H) bf16 value, loop-invariant.
        h_sc[...] = jnp.zeros_like(h_sc)
        c_sc[...] = jnp.zeros_like(c_sc)

        def step(t, carry):
            off = pl.multiple_of(t * TB, TB)          # sublane-aligned slab start
            h = h_sc[...]
            c = c_sc[...]
            # Gate pre-activations (already scaled: i/f/o columns carry a 0.5 factor).
            gates = gx_ref[pl.ds(off, TB), :] + jnp.dot(
                h.astype(bf16), whh, preferred_element_type=f32)
            tg = jnp.tanh(gates)                      # single full-width EUP pass
            i_g = tg[:, 0:H] * 0.5 + 0.5              # sigmoid(pre_i) = 0.5*tanh(0.5*pre_i)+0.5
            f_g = tg[:, H:2 * H] * 0.5 + 0.5
            g_g = tg[:, 2 * H:3 * H]                  # tanh(pre_g) (unscaled column block)
            o_g = tg[:, 3 * H:4 * H] * 0.5 + 0.5
            c_new = f_g * c + i_g * g_g
            h_new = o_g * jnp.tanh(c_new)
            c_sc[...] = c_new
            h_sc[...] = h_new
            if write_seq:
                h1_ref[pl.ds(off, TB), :] = h_new     # layer-1 sequence for layer 2
            return carry

        lax.fori_loop(0, T, step, 0)

    # ---- layer 1: input projection for all T steps hoisted into one MXU pass ----
    gx_ref[...] = (jnp.dot(x_ref[...], wih1_ref[...],
                           preferred_element_type=f32) + b1_ref[...])
    run_layer(whh1_ref[...], write_seq=True)

    # ---- layer 2: input projection on the whole layer-1 sequence (one MXU pass) ----
    gx_ref[...] = (jnp.dot(h1_ref[...].astype(bf16), wih2_ref[...],
                           preferred_element_type=f32) + b2_ref[...])
    run_layer(whh2_ref[...], write_seq=False)         # layer-2 sequence never stored

    # ---- head: relu(last h) @ uarch_rep^T, lane-dense N=128 output ----
    rep = jnp.maximum(h_sc[...], 0.0)
    out_ref[...] = jnp.dot(rep.astype(bf16), urep_ref[...],
                           preferred_element_type=f32)


# ----------------------------------------------------------------------------
# Wrapper: full InsLSTMDSE.forward (expects prepared/pre-transposed bf16 params).
# ----------------------------------------------------------------------------
def ins_lstm_dse_forward(x_btf, prepped):
    B, T, F = x_btf.shape
    H = NHIDDEN

    # Batch tile: multiple of 8 sublanes, capped at 512; aim for >= 2 tiles so the
    # "parallel" grid axis can populate both v7x TensorCores (no-op on v5e/v6e).
    tile_b = min(512, max(8, _round_up(-(-B // 2), 8)))
    b_pad = _round_up(B, tile_b)
    n_tiles = b_pad // tile_b

    # bf16 activations into the kernel (halves x DMA + VMEM; f32 accumulation inside).
    x = x_btf.astype(jnp.bfloat16)
    if b_pad != B:
        x = jnp.pad(x, ((0, b_pad - B), (0, 0), (0, 0)))
    # Host-side relayout glue: group batch tiles and make each tile time-major so every
    # in-kernel per-step slab is a contiguous, sublane-aligned slice.
    # TODO(synk): could avoid this one extra HBM pass via allow_input_fusion; low priority.
    x_tiles = x.reshape(n_tiles, tile_b, T, F).transpose(0, 2, 1, 3).reshape(
        n_tiles, T * tile_b, F)

    (wih1, whh1, b1), (wih2, whh2, b2) = prepped["lstm"]
    urep_t = prepped["urep_t"]

    kernel = functools.partial(_fused_lstm_dse_kernel,
                               tile_b=tile_b, seq_len=T, nhidden=H)

    def full_spec(arr):
        return pl.BlockSpec(arr.shape, lambda i, _nd=arr.ndim: (0,) * _nd)

    out_tiles = pl.pallas_call(
        kernel,
        out_shape=jax.ShapeDtypeStruct((n_tiles, tile_b, OUT_PAD), jnp.float32),
        grid=(n_tiles,),
        in_specs=[
            pl.BlockSpec((None, T * tile_b, F), lambda i: (i, 0, 0)),
            full_spec(wih1), full_spec(whh1), full_spec(b1),
            full_spec(wih2), full_spec(whh2), full_spec(b2),
            full_spec(urep_t),
        ],
        out_specs=pl.BlockSpec((None, tile_b, OUT_PAD), lambda i: (i, 0, 0)),
        scratch_shapes=[
            pltpu.VMEM((T * tile_b, 4 * H), jnp.float32),   # gate pre-acts (reused L1/L2)
            pltpu.VMEM((T * tile_b, H), jnp.float32),       # layer-1 hidden sequence
            pltpu.VMEM((tile_b, H), jnp.float32),           # h state
            pltpu.VMEM((tile_b, H), jnp.float32),           # c state
        ],
        compiler_params=pltpu.CompilerParams(
            dimension_semantics=("parallel",)),
    )(x_tiles, wih1, whh1, b1, wih2, whh2, b2, urep_t)

    return out_tiles.reshape(b_pad, OUT_PAD)[:B, :OUT_DIM]


# ----------------------------------------------------------------------------
# One-time, data-independent parameter preprocessing:
#   * pre-transpose LSTM weights to (in, 4H), cast to bf16,
#   * pre-scale i/f/o gate columns (and bias entries) by 0.5 (exact power-of-two) so
#     the kernel uses a single tanh per step for all four gates,
#   * run uarch_net once in f32 (parameter-only), pre-transpose + zero-pad the head
#     weight to (H, 128), cast to bf16.
# ----------------------------------------------------------------------------
def prepare_params(params):
    assert len(params["lstm"]) == NLAYERS
    H = NHIDDEN
    hp = lax.Precision.HIGHEST

    # 0.5 on i, f, o column blocks; 1.0 on the g (cell-candidate) block.
    gate_scale = jnp.concatenate([
        jnp.full((H,), 0.5, jnp.float32), jnp.full((H,), 0.5, jnp.float32),
        jnp.full((H,), 1.0, jnp.float32), jnp.full((H,), 0.5, jnp.float32)])

    lstm = []
    for (w_ih, w_hh, b) in params["lstm"]:
        wih_t = (jnp.asarray(w_ih).T * gate_scale).astype(jnp.bfloat16)   # (in, 4H)
        whh_t = (jnp.asarray(w_hh).T * gate_scale).astype(jnp.bfloat16)   # (H, 4H)
        b_s = (jnp.asarray(b) * gate_scale).astype(jnp.float32)           # (1, 4H)
        lstm.append((wih_t, whh_t, b_s))

    hid = jax.nn.relu(jnp.dot(params["uarch_paras"], params["w1"].T, precision=hp)
                      + params["b1"])
    u = jnp.dot(hid, params["w2"].T, precision=hp) + params["b2"]          # (18, H*tgt)
    urep_t = u.reshape(OUT_DIM, NHIDDEN).T                                 # (H, 72)
    urep_t = jnp.pad(urep_t, ((0, 0), (0, OUT_PAD - OUT_DIM)))             # (H, 128)
    return dict(lstm=lstm, urep_t=urep_t.astype(jnp.bfloat16))


# ----------------------------------------------------------------------------
# Deterministic parameter init (shapes from the module's __init__/init_paras).
# ----------------------------------------------------------------------------
def init_params(key):
    keys = jax.random.split(key, 3 * NLAYERS + 4)

    def unif(k, shape, fan):
        bound = 1.0 / np.sqrt(fan)
        return jax.random.uniform(k, shape, jnp.float32, -bound, bound)

    lstm = []
    nin = INPUT_LEN
    ki = 0
    for _ in range(NLAYERS):
        w_ih = unif(keys[ki], (4 * NHIDDEN, nin), NHIDDEN); ki += 1
        w_hh = unif(keys[ki], (4 * NHIDDEN, NHIDDEN), NHIDDEN); ki += 1
        # combined bias (b_ih + b_hh), kept 2D (1, 4H) for TPU-friendly layout
        b = unif(keys[ki], (1, 4 * NHIDDEN), NHIDDEN); ki += 1
        lstm.append((w_ih, w_hh, b))
        nin = NHIDDEN

    w1 = unif(keys[ki], (NPARAHIDDEN, NPARAS), NPARAS); ki += 1
    b1 = unif(keys[ki], (1, NPARAHIDDEN), NPARAS); ki += 1
    w2 = unif(keys[ki], (NHIDDEN * TGT_LEN, NPARAHIDDEN), NPARAHIDDEN); ki += 1
    b2 = unif(keys[ki], (1, NHIDDEN * TGT_LEN), NPARAHIDDEN); ki += 1

    uarch_paras = jnp.array(
        [[1, 1], [1, 2], [1, 3], [6, 4], [6, 5], [6, 6], [3, 3], [3, 4], [3, 2],
         [4, 3], [4, 4], [4, 2], [5, 3], [5, 4], [5, 5], [2, 3], [2, 4], [2, 2]],
        dtype=jnp.float32)                                       # init_paras() table

    return dict(lstm=lstm, w1=w1, b1=b1, w2=w2, b2=b2, uarch_paras=uarch_paras)


# ----------------------------------------------------------------------------
# Pure-JAX reference (mirrors the PyTorch forward).
#   bf16_matmul=True emulates the kernel's mixed precision (bf16 operands, f32
#   accumulation) so the kernel can be validated against it with a tight tolerance.
# ----------------------------------------------------------------------------
def reference_forward(x, params, bf16_matmul=False):
    hp = lax.Precision.HIGHEST

    def dotp(a, b):
        if bf16_matmul:
            return jnp.dot(a.astype(jnp.bfloat16), b.astype(jnp.bfloat16),
                           preferred_element_type=jnp.float32)
        return jnp.dot(a, b, precision=hp)

    B = x.shape[0]
    inp = x
    for (w_ih, w_hh, b) in params["lstm"]:
        H = w_hh.shape[1]
        h = jnp.zeros((B, H), jnp.float32)
        c = jnp.zeros((B, H), jnp.float32)
        outs = []
        for t in range(inp.shape[1]):
            gates = dotp(inp[:, t, :], w_ih.T) + dotp(h, w_hh.T) + b
            i = jax.nn.sigmoid(gates[:, :H])
            f = jax.nn.sigmoid(gates[:, H:2 * H])
            g = jnp.tanh(gates[:, 2 * H:3 * H])
            o = jax.nn.sigmoid(gates[:, 3 * H:4 * H])
            c = f * c + i * g
            h = o * jnp.tanh(c)
            outs.append(h)
        inp = jnp.stack(outs, axis=1)
    rep = jax.nn.relu(inp[:, -1, :])
    # uarch_net branch is parameter-only -> always f32/highest (mirrors prepare_params);
    # only the final head matmul follows the bf16_matmul flag.
    hid = jax.nn.relu(jnp.dot(params["uarch_paras"], params["w1"].T, precision=hp)
                      + params["b1"])
    u = jnp.dot(hid, params["w2"].T, precision=hp) + params["b2"]
    uarch_rep = u.reshape(OUT_DIM, NHIDDEN)
    return dotp(rep, uarch_rep.T)


if __name__ == "__main__":
    key = jax.random.PRNGKey(0)
    kx, kp = jax.random.split(key)
    params = init_params(kp)
    prepped = prepare_params(params)

    fwd = jax.jit(ins_lstm_dse_forward)

    # B=2: single-tile grid; B=10: multi-tile grid with batch padding (exercises the
    # "parallel" grid axis and the pad-and-discard path).
    for B in (2, 10):
        x = jax.random.normal(jax.random.fold_in(kx, B),
                              (B, SEQ_LEN, INPUT_LEN), jnp.float32)
        out = jax.block_until_ready(fwd(x, prepped))
        assert out.shape == (B, OUT_DIM), out.shape

        out_np = np.asarray(out)

        # Tight check against a reference that emulates the kernel's bf16-operand /
        # f32-accumulate matmuls (meaningful baseline for the mixed-precision kernel).
        ref_bf16 = np.asarray(reference_forward(x, params, bf16_matmul=True))
        np.testing.assert_allclose(out_np, ref_bf16, rtol=5e-3, atol=5e-3)

        # Loose, norm-based sanity check against the full-f32 reference
        # (bounds the total bf16 quantization error).
        ref_f32 = np.asarray(reference_forward(x, params, bf16_matmul=False))
        rel = np.linalg.norm(out_np - ref_f32) / np.linalg.norm(ref_f32)
        assert rel < 3e-2, f"relative error vs f32 reference too large: {rel}"

    print("KERNEL_OK")
</pallas_src>

<mosaic_0001>
module attributes {stable_mosaic.version = 11 : i64} {
  func.func @_fused_lstm_dse_kernel(%arg0: i32, %arg1: memref<1x64x16xbf16, #tpu.memory_space<vmem>>, %arg2: memref<16x128xbf16, #tpu.memory_space<vmem>>, %arg3: memref<32x128xbf16, #tpu.memory_space<vmem>>, %arg4: memref<1x128xf32, #tpu.memory_space<vmem>>, %arg5: memref<32x128xbf16, #tpu.memory_space<vmem>>, %arg6: memref<32x128xbf16, #tpu.memory_space<vmem>>, %arg7: memref<1x128xf32, #tpu.memory_space<vmem>>, %arg8: memref<32x128xbf16, #tpu.memory_space<vmem>>, %arg9: memref<1x8x128xf32, #tpu.memory_space<vmem>>, %arg10: memref<64x128xf32, #tpu.memory_space<vmem>>, %arg11: memref<64x32xf32, #tpu.memory_space<vmem>>, %arg12: memref<8x32xf32, #tpu.memory_space<vmem>>, %arg13: memref<8x32xf32, #tpu.memory_space<vmem>>) attributes {dimension_semantics = [#tpu.dimension_semantics<parallel>], iteration_bounds = array<i64: 1>, scalar_prefetch = 0 : i64, scratch_operands = 4 : i64, tpu.core_type = #tpu.core_type<tc>, window_params = [{transform_indices = @transform_0, window_bounds = array<i64: 1, 64, 16>}, {pipeline_mode = #tpu.pipeline_mode<synchronous>, transform_indices = @transform_1, window_bounds = array<i64: 16, 128>}, {pipeline_mode = #tpu.pipeline_mode<synchronous>, transform_indices = @transform_2, window_bounds = array<i64: 32, 128>}, {pipeline_mode = #tpu.pipeline_mode<synchronous>, transform_indices = @transform_3, window_bounds = array<i64: 1, 128>}, {pipeline_mode = #tpu.pipeline_mode<synchronous>, transform_indices = @transform_4, window_bounds = array<i64: 32, 128>}, {pipeline_mode = #tpu.pipeline_mode<synchronous>, transform_indices = @transform_5, window_bounds = array<i64: 32, 128>}, {pipeline_mode = #tpu.pipeline_mode<synchronous>, transform_indices = @transform_6, window_bounds = array<i64: 1, 128>}, {pipeline_mode = #tpu.pipeline_mode<synchronous>, transform_indices = @transform_7, window_bounds = array<i64: 32, 128>}, {transform_indices = @transform_8, window_bounds = array<i64: 1, 8, 128>}]} {
    %c0 = arith.constant 0 : index
    %c0_0 = arith.constant 0 : index
    %c0_1 = arith.constant 0 : index
    %0 = vector.load %arg1[%c0, %c0_0, %c0_1] : memref<1x64x16xbf16, #tpu.memory_space<vmem>>, vector<1x64x16xbf16>
    %1 = vector.shape_cast %0 : vector<1x64x16xbf16> to vector<64x16xbf16>
    %c0_2 = arith.constant 0 : index
    %c0_3 = arith.constant 0 : index
    %2 = vector.load %arg2[%c0_2, %c0_3] : memref<16x128xbf16, #tpu.memory_space<vmem>>, vector<16x128xbf16>
    %cst = arith.constant dense<0.000000e+00> : vector<64x128xf32>
    %3 = tpu.matmul %1, %2, %cst {dimension_numbers = #tpu.dot_dimension_numbers<[1], [0], [0], [1], [0, 0, 1, 1], [], []>} : vector<64x16xbf16>, vector<16x128xbf16>, vector<64x128xf32> -> vector<64x128xf32>
    %c0_4 = arith.constant 0 : index
    %c0_5 = arith.constant 0 : index
    %4 = vector.load %arg4[%c0_4, %c0_5] : memref<1x128xf32, #tpu.memory_space<vmem>>, vector<1x128xf32>
    %5 = vector.broadcast %4 : vector<1x128xf32> to vector<64x128xf32>
    %6 = arith.addf %3, %5 : vector<64x128xf32>
    %c0_6 = arith.constant 0 : index
    %c0_7 = arith.constant 0 : index
    %7 = vector.load %arg10[%c0_6, %c0_7] : memref<64x128xf32, #tpu.memory_space<vmem>>, vector<64x128xf32>
    tpu.vector_store %arg10[%c0_6, %c0_7], %6 {strides = array<i32>} : memref<64x128xf32, #tpu.memory_space<vmem>>, vector<64x128xf32>,
    %c0_8 = arith.constant 0 : index
    %c0_9 = arith.constant 0 : index
    %8 = vector.load %arg3[%c0_8, %c0_9] : memref<32x128xbf16, #tpu.memory_space<vmem>>, vector<32x128xbf16>
    %cst_10 = arith.constant 0.000000e+00 : f32
    %9 = vector.broadcast %cst_10 : f32 to vector<8x32xf32>
    %c0_11 = arith.constant 0 : index
    %c0_12 = arith.constant 0 : index
    %10 = vector.load %arg12[%c0_11, %c0_12] : memref<8x32xf32, #tpu.memory_space<vmem>>, vector<8x32xf32>
    tpu.vector_store %arg12[%c0_11, %c0_12], %9 {strides = array<i32>} : memref<8x32xf32, #tpu.memory_space<vmem>>, vector<8x32xf32>,
    %cst_13 = arith.constant 0.000000e+00 : f32
    %11 = vector.broadcast %cst_13 : f32 to vector<8x32xf32>
    %c0_14 = arith.constant 0 : index
    %c0_15 = arith.constant 0 : index
    %12 = vector.load %arg13[%c0_14, %c0_15] : memref<8x32xf32, #tpu.memory_space<vmem>>, vector<8x32xf32>
    tpu.vector_store %arg13[%c0_14, %c0_15], %11 {strides = array<i32>} : memref<8x32xf32, #tpu.memory_space<vmem>>, vector<8x32xf32>,
    %c0_i32 = arith.constant 0 : i32
    %c8_i32 = arith.constant 8 : i32
    %13 = arith.addi %c0_i32, %c8_i32 : i32
    %c1_i32 = arith.constant 1 : i32
    scf.for %arg14 = %c0_i32 to %13 step %c1_i32  : i32 {
      %c8_i32_47 = arith.constant 8 : i32
      %37 = arith.muli %arg14, %c8_i32_47 : i32
      %38 = tpu.assume_multiple %37, 8 : i32
      %c0_48 = arith.constant 0 : index
      %c0_49 = arith.constant 0 : index
      %39 = vector.load %arg12[%c0_48, %c0_49] : memref<8x32xf32, #tpu.memory_space<vmem>>, vector<8x32xf32>
      %c0_50 = arith.constant 0 : index
      %c0_51 = arith.constant 0 : index
      %40 = vector.load %arg13[%c0_50, %c0_51] : memref<8x32xf32, #tpu.memory_space<vmem>>, vector<8x32xf32>
      %41 = arith.index_cast %38 : i32 to index
      %c0_52 = arith.constant 0 : index
      %42 = vector.load %arg10[%41, %c0_52] : memref<64x128xf32, #tpu.memory_space<vmem>>, vector<8x128xf32>
      %43 = arith.truncf %39 : vector<8x32xf32> to vector<8x32xbf16>
      %cst_53 = arith.constant dense<0.000000e+00> : vector<8x128xf32>
      %44 = tpu.matmul %43, %8, %cst_53 {dimension_numbers = #tpu.dot_dimension_numbers<[1], [0], [0], [1], [0, 0, 1, 1], [], []>} : vector<8x32xbf16>, vector<32x128xbf16>, vector<8x128xf32> -> vector<8x128xf32>
      %45 = arith.addf %42, %44 : vector<8x128xf32>
      %46 = math.tanh %45 : vector<8x128xf32>
      %47 = vector.extract_strided_slice %46 {offsets = [0, 0], sizes = [8, 32], strides = [1, 1]} : vector<8x128xf32> to vector<8x32xf32>
      %cst_54 = arith.constant 5.000000e-01 : f32
      %48 = vector.broadcast %cst_54 : f32 to vector<8x32xf32>
      %49 = arith.mulf %47, %48 : vector<8x32xf32>
      %cst_55 = arith.constant 5.000000e-01 : f32
      %50 = vector.broadcast %cst_55 : f32 to vector<8x32xf32>
      %51 = arith.addf %49, %50 : vector<8x32xf32>
      %52 = vector.extract_strided_slice %46 {offsets = [0, 32], sizes = [8, 32], strides = [1, 1]} : vector<8x128xf32> to vector<8x32xf32>
      %cst_56 = arith.constant 5.000000e-01 : f32
      %53 = vector.broadcast %cst_56 : f32 to vector<8x32xf32>
      %54 = arith.mulf %52, %53 : vector<8x32xf32>
      %cst_57 = arith.constant 5.000000e-01 : f32
      %55 = vector.broadcast %cst_57 : f32 to vector<8x32xf32>
      %56 = arith.addf %54, %55 : vector<8x32xf32>
      %57 = vector.extract_strided_slice %46 {offsets = [0, 64], sizes = [8, 32], strides = [1, 1]} : vector<8x128xf32> to vector<8x32xf32>
      %58 = vector.extract_strided_slice %46 {offsets = [0, 96], sizes = [8, 32], strides = [1, 1]} : vector<8x128xf32> to vector<8x32xf32>
      %cst_58 = arith.constant 5.000000e-01 : f32
      %59 = vector.broadcast %cst_58 : f32 to vector<8x32xf32>
      %60 = arith.mulf %58, %59 : vector<8x32xf32>
      %cst_59 = arith.constant 5.000000e-01 : f32
      %61 = vector.broadcast %cst_59 : f32 to vector<8x32xf32>
      %62 = arith.addf %60, %61 : vector<8x32xf32>
      %63 = arith.mulf %56, %40 : vector<8x32xf32>
      %64 = arith.mulf %51, %57 : vector<8x32xf32>
      %65 = arith.addf %63, %64 : vector<8x32xf32>
      %66 = math.tanh %65 : vector<8x32xf32>
      %67 = arith.mulf %62, %66 : vector<8x32xf32>
      %c0_60 = arith.constant 0 : index
      %c0_61 = arith.constant 0 : index
      %68 = vector.load %arg13[%c0_60, %c0_61] : memref<8x32xf32, #tpu.memory_space<vmem>>, vector<8x32xf32>
      tpu.vector_store %arg13[%c0_60, %c0_61], %65 {strides = array<i32>} : memref<8x32xf32, #tpu.memory_space<vmem>>, vector<8x32xf32>,
      %c0_62 = arith.constant 0 : index
      %c0_63 = arith.constant 0 : index
      %69 = vector.load %arg12[%c0_62, %c0_63] : memref<8x32xf32, #tpu.memory_space<vmem>>, vector<8x32xf32>
      tpu.vector_store %arg12[%c0_62, %c0_63], %67 {strides = array<i32>} : memref<8x32xf32, #tpu.memory_space<vmem>>, vector<8x32xf32>,
      %70 = arith.index_cast %38 : i32 to index
      %c0_64 = arith.constant 0 : index
      %71 = vector.load %arg11[%70, %c0_64] : memref<64x32xf32, #tpu.memory_space<vmem>>, vector<8x32xf32>
      tpu.vector_store %arg11[%70, %c0_64], %67 {strides = array<i32>} : memref<64x32xf32, #tpu.memory_space<vmem>>, vector<8x32xf32>,
    }
    %c8_i32_16 = arith.constant 8 : i32
    %c0_17 = arith.constant 0 : index
    %c0_18 = arith.constant 0 : index
    %14 = vector.load %arg11[%c0_17, %c0_18] : memref<64x32xf32, #tpu.memory_space<vmem>>, vector<64x32xf32>
    %15 = arith.truncf %14 : vector<64x32xf32> to vector<64x32xbf16>
    %c0_19 = arith.constant 0 : index
    %c0_20 = arith.constant 0 : index
    %16 = vector.load %arg5[%c0_19, %c0_20] : memref<32x128xbf16, #tpu.memory_space<vmem>>, vector<32x128xbf16>
    %cst_21 = arith.constant dense<0.000000e+00> : vector<64x128xf32>
    %17 = tpu.matmul %15, %16, %cst_21 {dimension_numbers = #tpu.dot_dimension_numbers<[1], [0], [0], [1], [0, 0, 1, 1], [], []>} : vector<64x32xbf16>, vector<32x128xbf16>, vector<64x128xf32> -> vector<64x128xf32>
    %c0_22 = arith.constant 0 : index
    %c0_23 = arith.constant 0 : index
    %18 = vector.load %arg7[%c0_22, %c0_23] : memref<1x128xf32, #tpu.memory_space<vmem>>, vector<1x128xf32>
    %19 = vector.broadcast %18 : vector<1x128xf32> to vector<64x128xf32>
    %20 = arith.addf %17, %19 : vector<64x128xf32>
    %c0_24 = arith.constant 0 : index
    %c0_25 = arith.constant 0 : index
    %21 = vector.load %arg10[%c0_24, %c0_25] : memref<64x128xf32, #tpu.memory_space<vmem>>, vector<64x128xf32>
    tpu.vector_store %arg10[%c0_24, %c0_25], %20 {strides = array<i32>} : memref<64x128xf32, #tpu.memory_space<vmem>>, vector<64x128xf32>,
    %c0_26 = arith.constant 0 : index
    %c0_27 = arith.constant 0 : index
    %22 = vector.load %arg6[%c0_26, %c0_27] : memref<32x128xbf16, #tpu.memory_space<vmem>>, vector<32x128xbf16>
    %cst_28 = arith.constant 0.000000e+00 : f32
    %23 = vector.broadcast %cst_28 : f32 to vector<8x32xf32>
    %c0_29 = arith.constant 0 : index
    %c0_30 = arith.constant 0 : index
    %24 = vector.load %arg12[%c0_29, %c0_30] : memref<8x32xf32, #tpu.memory_space<vmem>>, vector<8x32xf32>
    tpu.vector_store %arg12[%c0_29, %c0_30], %23 {strides = array<i32>} : memref<8x32xf32, #tpu.memory_space<vmem>>, vector<8x32xf32>,
    %cst_31 = arith.constant 0.000000e+00 : f32
    %25 = vector.broadcast %cst_31 : f32 to vector<8x32xf32>
    %c0_32 = arith.constant 0 : index
    %c0_33 = arith.constant 0 : index
    %26 = vector.load %arg13[%c0_32, %c0_33] : memref<8x32xf32, #tpu.memory_space<vmem>>, vector<8x32xf32>
    tpu.vector_store %arg13[%c0_32, %c0_33], %25 {strides = array<i32>} : memref<8x32xf32, #tpu.memory_space<vmem>>, vector<8x32xf32>,
    %c0_i32_34 = arith.constant 0 : i32
    %c8_i32_35 = arith.constant 8 : i32
    %27 = arith.addi %c0_i32_34, %c8_i32_35 : i32
    %c1_i32_36 = arith.constant 1 : i32
    scf.for %arg14 = %c0_i32_34 to %27 step %c1_i32_36  : i32 {
      %c8_i32_47 = arith.constant 8 : i32
      %37 = arith.muli %arg14, %c8_i32_47 : i32
      %38 = tpu.assume_multiple %37, 8 : i32
      %c0_48 = arith.constant 0 : index
      %c0_49 = arith.constant 0 : index
      %39 = vector.load %arg12[%c0_48, %c0_49] : memref<8x32xf32, #tpu.memory_space<vmem>>, vector<8x32xf32>
      %c0_50 = arith.constant 0 : index
      %c0_51 = arith.constant 0 : index
      %40 = vector.load %arg13[%c0_50, %c0_51] : memref<8x32xf32, #tpu.memory_space<vmem>>, vector<8x32xf32>
      %41 = arith.index_cast %38 : i32 to index
      %c0_52 = arith.constant 0 : index
      %42 = vector.load %arg10[%41, %c0_52] : memref<64x128xf32, #tpu.memory_space<vmem>>, vector<8x128xf32>
      %43 = arith.truncf %39 : vector<8x32xf32> to vector<8x32xbf16>
      %cst_53 = arith.constant dense<0.000000e+00> : vector<8x128xf32>
      %44 = tpu.matmul %43, %22, %cst_53 {dimension_numbers = #tpu.dot_dimension_numbers<[1], [0], [0], [1], [0, 0, 1, 1], [], []>} : vector<8x32xbf16>, vector<32x128xbf16>, vector<8x128xf32> -> vector<8x128xf32>
      %45 = arith.addf %42, %44 : vector<8x128xf32>
      %46 = math.tanh %45 : vector<8x128xf32>
      %47 = vector.extract_strided_slice %46 {offsets = [0, 0], sizes = [8, 32], strides = [1, 1]} : vector<8x128xf32> to vector<8x32xf32>
      %cst_54 = arith.constant 5.000000e-01 : f32
      %48 = vector.broadcast %cst_54 : f32 to vector<8x32xf32>
      %49 = arith.mulf %47, %48 : vector<8x32xf32>
      %cst_55 = arith.constant 5.000000e-01 : f32
      %50 = vector.broadcast %cst_55 : f32 to vector<8x32xf32>
      %51 = arith.addf %49, %50 : vector<8x32xf32>
      %52 = vector.extract_strided_slice %46 {offsets = [0, 32], sizes = [8, 32], strides = [1, 1]} : vector<8x128xf32> to vector<8x32xf32>
      %cst_56 = arith.constant 5.000000e-01 : f32
      %53 = vector.broadcast %cst_56 : f32 to vector<8x32xf32>
      %54 = arith.mulf %52, %53 : vector<8x32xf32>
      %cst_57 = arith.constant 5.000000e-01 : f32
      %55 = vector.broadcast %cst_57 : f32 to vector<8x32xf32>
      %56 = arith.addf %54, %55 : vector<8x32xf32>
      %57 = vector.extract_strided_slice %46 {offsets = [0, 64], sizes = [8, 32], strides = [1, 1]} : vector<8x128xf32> to vector<8x32xf32>
      %58 = vector.extract_strided_slice %46 {offsets = [0, 96], sizes = [8, 32], strides = [1, 1]} : vector<8x128xf32> to vector<8x32xf32>
      %cst_58 = arith.constant 5.000000e-01 : f32
      %59 = vector.broadcast %cst_58 : f32 to vector<8x32xf32>
      %60 = arith.mulf %58, %59 : vector<8x32xf32>
      %cst_59 = arith.constant 5.000000e-01 : f32
      %61 = vector.broadcast %cst_59 : f32 to vector<8x32xf32>
      %62 = arith.addf %60, %61 : vector<8x32xf32>
      %63 = arith.mulf %56, %40 : vector<8x32xf32>
      %64 = arith.mulf %51, %57 : vector<8x32xf32>
      %65 = arith.addf %63, %64 : vector<8x32xf32>
      %66 = math.tanh %65 : vector<8x32xf32>
      %67 = arith.mulf %62, %66 : vector<8x32xf32>
      %c0_60 = arith.constant 0 : index
      %c0_61 = arith.constant 0 : index
      %68 = vector.load %arg13[%c0_60, %c0_61] : memref<8x32xf32, #tpu.memory_space<vmem>>, vector<8x32xf32>
      tpu.vector_store %arg13[%c0_60, %c0_61], %65 {strides = array<i32>} : memref<8x32xf32, #tpu.memory_space<vmem>>, vector<8x32xf32>,
      %c0_62 = arith.constant 0 : index
      %c0_63 = arith.constant 0 : index
      %69 = vector.load %arg12[%c0_62, %c0_63] : memref<8x32xf32, #tpu.memory_space<vmem>>, vector<8x32xf32>
      tpu.vector_store %arg12[%c0_62, %c0_63], %67 {strides = array<i32>} : memref<8x32xf32, #tpu.memory_space<vmem>>, vector<8x32xf32>,
    }
    %c8_i32_37 = arith.constant 8 : i32
    %c0_38 = arith.constant 0 : index
    %c0_39 = arith.constant 0 : index
    %28 = vector.load %arg12[%c0_38, %c0_39] : memref<8x32xf32, #tpu.memory_space<vmem>>, vector<8x32xf32>
    %cst_40 = arith.constant 0.000000e+00 : f32
    %29 = vector.broadcast %cst_40 : f32 to vector<8x32xf32>
    %30 = arith.maximumf %28, %29 : vector<8x32xf32>
    %31 = arith.truncf %30 : vector<8x32xf32> to vector<8x32xbf16>
    %c0_41 = arith.constant 0 : index
    %c0_42 = arith.constant 0 : index
    %32 = vector.load %arg8[%c0_41, %c0_42] : memref<32x128xbf16, #tpu.memory_space<vmem>>, vector<32x128xbf16>
    %cst_43 = arith.constant dense<0.000000e+00> : vector<8x128xf32>
    %33 = tpu.matmul %31, %32, %cst_43 {dimension_numbers = #tpu.dot_dimension_numbers<[1], [0], [0], [1], [0, 0, 1, 1], [], []>} : vector<8x32xbf16>, vector<32x128xbf16>, vector<8x128xf32> -> vector<8x128xf32>
    %c0_44 = arith.constant 0 : index
    %c0_45 = arith.constant 0 : index
    %c0_46 = arith.constant 0 : index
    %34 = vector.load %arg9[%c0_44, %c0_45, %c0_46] : memref<1x8x128xf32, #tpu.memory_space<vmem>>, vector<1x8x128xf32>
    %35 = vector.shape_cast %34 : vector<1x8x128xf32> to vector<8x128xf32>
    %36 = vector.shape_cast %33 : vector<8x128xf32> to vector<1x8x128xf32>
    tpu.vector_store %arg9[%c0_44, %c0_45, %c0_46], %36 {strides = array<i32>} : memref<1x8x128xf32, #tpu.memory_space<vmem>>, vector<1x8x128xf32>,
    return
  }
  func.func @transform_0(%arg0: i32) -> (i32, i32, i32) {
    %c0_i32 = arith.constant 0 : i32
    %c0_i32_0 = arith.constant 0 : i32
    %c0_i32_1 = arith.constant 0 : i32
    return %arg0, %c0_i32, %c0_i32_0 : i32, i32, i32
  }
  func.func @transform_1(%arg0: i32) -> (i32, i32) {
    %c0_i32 = arith.constant 0 : i32
    %c0_i32_0 = arith.constant 0 : i32
    %c0_i32_1 = arith.constant 0 : i32
    return %c0_i32, %c0_i32_0 : i32, i32
  }
  func.func @transform_2(%arg0: i32) -> (i32, i32) {
    %c0_i32 = arith.constant 0 : i32
    %c0_i32_0 = arith.constant 0 : i32
    %c0_i32_1 = arith.constant 0 : i32
    return %c0_i32, %c0_i32_0 : i32, i32
  }
  func.func @transform_3(%arg0: i32) -> (i32, i32) {
    %c0_i32 = arith.constant 0 : i32
    %c0_i32_0 = arith.constant 0 : i32
    %c0_i32_1 = arith.constant 0 : i32
    return %c0_i32, %c0_i32_0 : i32, i32
  }
  func.func @transform_4(%arg0: i32) -> (i32, i32) {
    %c0_i32 = arith.constant 0 : i32
    %c0_i32_0 = arith.constant 0 : i32
    %c0_i32_1 = arith.constant 0 : i32
    return %c0_i32, %c0_i32_0 : i32, i32
  }
  func.func @transform_5(%arg0: i32) -> (i32, i32) {
    %c0_i32 = arith.constant 0 : i32
    %c0_i32_0 = arith.constant 0 : i32
    %c0_i32_1 = arith.constant 0 : i32
    return %c0_i32, %c0_i32_0 : i32, i32
  }
  func.func @transform_6(%arg0: i32) -> (i32, i32) {
    %c0_i32 = arith.constant 0 : i32
    %c0_i32_0 = arith.constant 0 : i32
    %c0_i32_1 = arith.constant 0 : i32
    return %c0_i32, %c0_i32_0 : i32, i32
  }
  func.func @transform_7(%arg0: i32) -> (i32, i32) {
    %c0_i32 = arith.constant 0 : i32
    %c0_i32_0 = arith.constant 0 : i32
    %c0_i32_1 = arith.constant 0 : i32
    return %c0_i32, %c0_i32_0 : i32, i32
  }
  func.func @transform_8(%arg0: i32) -> (i32, i32, i32) {
    %c0_i32 = arith.constant 0 : i32
    %c0_i32_0 = arith.constant 0 : i32
    %c0_i32_1 = arith.constant 0 : i32
    return %arg0, %c0_i32, %c0_i32_0 : i32, i32, i32
  }
}

</mosaic_0001>

<llo_original>
// kernel: ins_lstm_dse_forward.1
$region0: #{ins_lstm_dse_forward.1}
  #allocation0 [shape = 'u32[]', space=smem, size = 0x4, offset = 0x4, fixed_abs, tag = 'smem constant byte address 0x4 - core index']
  #allocation1 [shape = 'u32[144,128]{1,0:T(1,128)}', space=vmem, size = 0x12000, scoped, tag = 'internal scratch']
  #allocation2 [shape = 'f32[64,128]{1,0:T(8,128)}', space=vmem, size = 0x8000, scoped, tag = 'scratch operand']
  #allocation3 [shape = 'f32[64,32]{1,0:T(8,128)}', space=vmem, size = 0x8000, scoped, tag = 'scratch operand']
  #allocation4 [shape = 'f32[8,32]{1,0:T(8,128)}', space=vmem, size = 0x1000, scoped, tag = 'scratch operand']
  #allocation5 [shape = 'f32[8,32]{1,0:T(8,128)}', space=vmem, size = 0x1000, scoped, tag = 'scratch operand']
  %s0 = inlined_call_operand.vmem [shape: bf16[1,64,16], index: 0, kind: input, shape index: {}]
  %s1 = inlined_call_operand.vmem [shape: bf16[16,128], index: 1, kind: input, shape index: {}]
  %s2 = inlined_call_operand.vmem [shape: bf16[32,128], index: 2, kind: input, shape index: {}]
  %s3 = inlined_call_operand.vmem [shape: f32[1,128], index: 3, kind: input, shape index: {}]
  %s4 = inlined_call_operand.vmem [shape: bf16[32,128], index: 4, kind: input, shape index: {}]
  %s5 = inlined_call_operand.vmem [shape: bf16[32,128], index: 5, kind: input, shape index: {}]
  %s6 = inlined_call_operand.vmem [shape: f32[1,128], index: 6, kind: input, shape index: {}]
  %s7 = inlined_call_operand.vmem [shape: bf16[32,128], index: 7, kind: input, shape index: {}]
  %s8 = inlined_call_operand.vmem [shape: f32[1,8,128], index: 8, kind: output, shape index: {}]
  %s9 = sld [smem:[#allocation0]]
  $region56: #{ins_lstm_dse_forward.1} parent=0
    _
  %s11 = ssub.s32 1, %s9
  %s12 = scalar_select 0, %s11, %s9
  // Predicated region
  $region2: #{ins_lstm_dse_forward.1} parent=0 // pred_check
    _
  $region3: #{ins_lstm_dse_forward.1} parent=0 // pred_check_branch
    %14 = sbr.rel (0) target = $region5
  $region4: #{ins_lstm_dse_forward.1} parent=0 // pred_region
    _
  $region5: #{ins_lstm_dse_forward.1} parent=0 // pred_fallthru
    _
  // Predicated region
  $region6: #{ins_lstm_dse_forward.1} parent=0 // pred_check
    _
  $region7: #{ins_lstm_dse_forward.1} parent=0 // pred_check_branch
    %16 = sbr.rel (0) target = $region9
  $region8: #{ins_lstm_dse_forward.1} parent=0 // pred_region
    _
  $region9: #{ins_lstm_dse_forward.1} parent=0 // pred_fallthru
    _
  // Predicated region
  $region10: #{ins_lstm_dse_forward.1} parent=0 // pred_check
    _
  $region11: #{ins_lstm_dse_forward.1} parent=0 // pred_check_branch
    %18 = sbr.rel (0) target = $region13
  $region12: #{ins_lstm_dse_forward.1} parent=0 // pred_region
    _
  $region13: #{ins_lstm_dse_forward.1} parent=0 // pred_fallthru
    _
  // Predicated region
  $region14: #{ins_lstm_dse_forward.1} parent=0 // pred_check
    _
  $region15: #{ins_lstm_dse_forward.1} parent=0 // pred_check_branch
    %20 = sbr.rel (0) target = $region17
  $region16: #{ins_lstm_dse_forward.1} parent=0 // pred_region
    _
  $region17: #{ins_lstm_dse_forward.1} parent=0 // pred_fallthru
    _
  // Predicated region
  $region18: #{ins_lstm_dse_forward.1} parent=0 // pred_check
    _
  $region19: #{ins_lstm_dse_forward.1} parent=0 // pred_check_branch
    %22 = sbr.rel (0) target = $region21
  $region20: #{ins_lstm_dse_forward.1} parent=0 // pred_region
    _
  $region21: #{ins_lstm_dse_forward.1} parent=0 // pred_fallthru
    _
  // Predicated region
  $region22: #{ins_lstm_dse_forward.1} parent=0 // pred_check
    _
  $region23: #{ins_lstm_dse_forward.1} parent=0 // pred_check_branch
    %24 = sbr.rel (0) target = $region25
  $region24: #{ins_lstm_dse_forward.1} parent=0 // pred_region
    _
  $region25: #{ins_lstm_dse_forward.1} parent=0 // pred_fallthru
    _
  // Predicated region
  $region26: #{ins_lstm_dse_forward.1} parent=0 // pred_check
    _
  $region27: #{ins_lstm_dse_forward.1} parent=0 // pred_check_branch
    %26 = sbr.rel (0) target = $region29
  $region28: #{ins_lstm_dse_forward.1} parent=0 // pred_region
    _
  $region29: #{ins_lstm_dse_forward.1} parent=0 // pred_fallthru
    _
  // Predicated region
  $region30: #{ins_lstm_dse_forward.1} parent=0 // pred_check
    _
  $region31: #{ins_lstm_dse_forward.1} parent=0 // pred_check_branch
    %28 = sbr.rel (0) target = $region33
  $region32: #{ins_lstm_dse_forward.1} parent=0 // pred_region
    _
  $region33: #{ins_lstm_dse_forward.1} parent=0 // pred_fallthru
    _
  %v30 = vld [vmem:[%s0] sm:$0xf]
  %v31 = vld [vmem:[%s0 + $0x4] sm:$0xf]
  %v32 = vld [vmem:[%s0 + $0x8] sm:$0xf]
  %v33 = vld [vmem:[%s0 + $0xc] sm:$0xf]
  %v34 = vld [vmem:[%s0 + $0x10] sm:$0xf]
  %v35 = vld [vmem:[%s0 + $0x14] sm:$0xf]
  %v36 = vld [vmem:[%s0 + $0x18] sm:$0xf]
  %v37 = vld [vmem:[%s0 + $0x1c] sm:$0xf]
  %v38 = vld [vmem:[%s1] sm:$0xf]
  %v39 = vld [vmem:[%s1 + $0x4] sm:$0xf]
  %v40 = vld [vmem:[%s3] sm:$0x1]
  %v42 = vlaneseq
  %v43 = vshrl.u32 %v42, 7
  %v44 = vsub.s32 0, %v43
  %v45 = vrot.slane %v40, %v44
  %v55 = vunpack.c.l.b16 %v30
  %v56 = vunpack.c.l.b16 %v31
  %v57 = vunpack.c.l.b16 %v32
  %v58 = vunpack.c.l.b16 %v33
  %v59 = vunpack.c.l.b16 %v34
  %v60 = vunpack.c.l.b16 %v35
  %v61 = vunpack.c.l.b16 %v36
  %v62 = vunpack.c.l.b16 %v37
  %v63 = vpack.c.b16 %v56, %v55
  %v64 = vpack.c.b16 %v58, %v57
  %v65 = vpack.c.b16 %v60, %v59
  %v66 = vpack.c.b16 %v62, %v61
  %v69 = vunpack.c.l.b16 %v38
  %v70 = vunpack.c.l.b16 %v39
  %v71 = vpack.c.b16 %v70, %v69
  %vm73 = vcmask 130048
  %v75 = vsel %vm73, %v63, 0
  %v78 = vsel %vm73, %v64, 0
  %v81 = vsel %vm73, %v65, 0
  %v84 = vsel %vm73, %v66, 0
  %86 = vmatprep.subr.bf16.mxu0 0
  %87 = vmatpush1.bf16.msra.mxu0 0
  %88 = vmatprep.subr.bf16.mxu0 0
  %89 = vmatpush1.bf16.msra.mxu0 0
  %90 = vmatprep.subr.bf16.mxu0 0
  %91 = vmatpush1.bf16.msra.mxu0 0
  %92 = vmatprep.subr.bf16.mxu0 0
  %93 = vmatpush1.bf16.msra.mxu0 0
  %94 = vmatprep.subr.bf16.mxu0 0
  %95 = vmatpush1.bf16.msra.mxu0 0
  %96 = vmatprep.subr.bf16.mxu0 0
  %97 = vmatpush1.bf16.msra.mxu0 0
  %98 = vmatprep.subr.bf16.mxu0 0
  %99 = vmatpush1.bf16.msra.mxu0 0
  %100 = vmatprep.subr.bf16.mxu0 0
  %101 = vmatpush1.bf16.msra.mxu0 %v71
  %102 = vmatprep.subr.bf16.mxu0 0
  %103 = vmatpush2.bf16.msra.mxu0 0
  %104 = vmatprep.subr.bf16.mxu0 0
  %105 = vmatpush2.bf16.msra.mxu0 0
  %106 = vmatprep.subr.bf16.mxu0 0
  %107 = vmatpush2.bf16.msra.mxu0 0
  %108 = vmatprep.subr.bf16.mxu0 0
  %109 = vmatpush2.bf16.msra.mxu0 0
  %110 = vmatprep.subr.bf16.mxu0 0
  %111 = vmatpush2.bf16.msra.mxu0 0
  %112 = vmatprep.subr.bf16.mxu0 0
  %113 = vmatpush2.bf16.msra.mxu0 0
  %114 = vmatprep.subr.bf16.mxu0 0
  %115 = vmatpush2.bf16.msra.mxu0 0
  %116 = vmatprep.subr.bf16.mxu0 0
  %117 = vmatpush2.bf16.msra.mxu0 0
  %118 = vmatprep.mubr.bf16.mxu0 0
  %119 = vmatmul.mubr.bf16.gmra.mxu0 %v75
  %v120 = vpop.f32.mrf.mxu0
  %v121 = vadd.f32 %v45, %v120
  %v122 = vpop.f32.mrf.mxu0
  %v123 = vpop.f32.mrf.mxu0
  %v124 = vadd.f32 %v45, %v123
  %v125 = vpop.f32.mrf.mxu0
  %126 = vmatprep.mubr.bf16.mxu0 0
  %127 = vmatmul.mubr.bf16.gmra.mxu0 %v78
  %v128 = vpop.f32.mrf.mxu0
  %v129 = vadd.f32 %v45, %v128
  %v130 = vpop.f32.mrf.mxu0
  %v131 = vpop.f32.mrf.mxu0
  %v132 = vadd.f32 %v45, %v131
  %v133 = vpop.f32.mrf.mxu0
  %134 = vmatprep.mubr.bf16.mxu0 0
  %135 = vmatmul.mubr.bf16.gmra.mxu0 %v81
  %v136 = vpop.f32.mrf.mxu0
  %v137 = vadd.f32 %v45, %v136
  %v138 = vpop.f32.mrf.mxu0
  %v139 = vpop.f32.mrf.mxu0
  %v140 = vadd.f32 %v45, %v139
  %v141 = vpop.f32.mrf.mxu0
  %142 = vmatprep.mubr.bf16.mxu0 0
  %143 = vmatmul.mubr.bf16.gmra.mxu0 %v84
  %v144 = vpop.f32.mrf.mxu0
  %v145 = vadd.f32 %v45, %v144
  %v146 = vpop.f32.mrf.mxu0
  %v147 = vpop.f32.mrf.mxu0
  %v148 = vadd.f32 %v45, %v147
  %v149 = vpop.f32.mrf.mxu0
  %150 = vdwg.mxu0
  %151 = vst [vmem:[#allocation2] sm:$0xff] %v121
  %152 = vst [vmem:[#allocation2 + $0x8] sm:$0xff] %v124
  %153 = vst [vmem:[#allocation2 + $0x10] sm:$0xff] %v129
  %154 = vst [vmem:[#allocation2 + $0x18] sm:$0xff] %v132
  %155 = vst [vmem:[#allocation2 + $0x20] sm:$0xff] %v137
  %156 = vst [vmem:[#allocation2 + $0x28] sm:$0xff] %v140
  %157 = vst [vmem:[#allocation2 + $0x30] sm:$0xff] %v145
  %158 = vst [vmem:[#allocation2 + $0x38] sm:$0xff] %v148
  %v159 = vld [vmem:[%s2] sm:$0xf]
  %v160 = vld [vmem:[%s2 + $0x4] sm:$0xf]
  %v161 = vld [vmem:[%s2 + $0x8] sm:$0xf]
  %v162 = vld [vmem:[%s2 + $0xc] sm:$0xf]
  %vm163 = vcmask 261120
  %164 = vst.msk [vmem:[#allocation4] sm:$0xff] %vm163, 0.0
  %165 = vst.msk [vmem:[#allocation5] sm:$0xff] %vm163, 0.0
  loop: start=0, step=1, limit=8
  $region34: #{ins_lstm_dse_forward.1} parent=0 // loop_pre_header
    _
  $region35: #{ins_lstm_dse_forward.1} parent=0 // loop_header
    %s167 = sphi 0, %s171
    %p168 = scmp.ge.s32.totalorder %s167, 8
  $region36: #{ins_lstm_dse_forward.1} parent=0 // loop_header_branch
    %170 = sbr.rel (%p168) target = $region40
  $region37: #{ins_lstm_dse_forward.1} parent=0 // loop_body
    %s172 = smul.u32 %s167, 8
    %v173 = vld [vmem:[#allocation4] sm:$0xff]
    %v174 = vld [vmem:[#allocation5] sm:$0xff]
    %s175 = scalar_lea.vmem [#allocation2], %s172
    %v176 = vld [vmem:[%s175] sm:$0xff]
    %v177 = vpack.c.bf16 %v173, %v173
    %v182 = vunpack.c.l.b16 %v159
    %v183 = vunpack.c.l.b16 %v160
    %v184 = vunpack.c.l.b16 %v161
    %v185 = vunpack.c.l.b16 %v162
    %v186 = vpack.c.b16 %v183, %v182
    %v187 = vpack.c.b16 %v185, %v184
    %v191 = vsel %vm163, %v177, 0
    %193 = vmatprep.subr.bf16.mxu0 0
    %194 = vmatpush1.bf16.msra.mxu0 0
    %195 = vmatprep.subr.bf16.mxu0 0
    %196 = vmatpush1.bf16.msra.mxu0 0
    %197 = vmatprep.subr.bf16.mxu0 0
    %198 = vmatpush1.bf16.msra.mxu0 0
    %199 = vmatprep.subr.bf16.mxu0 0
    %200 = vmatpush1.bf16.msra.mxu0 0
    %201 = vmatprep.subr.bf16.mxu0 0
    %202 = vmatpush1.bf16.msra.mxu0 0
    %203 = vmatprep.subr.bf16.mxu0 0
    %204 = vmatpush1.bf16.msra.mxu0 0
    %205 = vmatprep.subr.bf16.mxu0 0
    %206 = vmatpush1.bf16.msra.mxu0 %v187
    %207 = vmatprep.subr.bf16.mxu0 0
    %208 = vmatpush1.bf16.msra.mxu0 %v186
    %209 = vmatprep.subr.bf16.mxu0 0
    %210 = vmatpush2.bf16.msra.mxu0 0
    %211 = vmatprep.subr.bf16.mxu0 0
    %212 = vmatpush2.bf16.msra.mxu0 0
    %213 = vmatprep.subr.bf16.mxu0 0
    %214 = vmatpush2.bf16.msra.mxu0 0
    %215 = vmatprep.subr.bf16.mxu0 0
    %216 = vmatpush2.bf16.msra.mxu0 0
    %217 = vmatprep.subr.bf16.mxu0 0
    %218 = vmatpush2.bf16.msra.mxu0 0
    %219 = vmatprep.subr.bf16.mxu0 0
    %220 = vmatpush2.bf16.msra.mxu0 0
    %221 = vmatprep.subr.bf16.mxu0 0
    %222 = vmatpush2.bf16.msra.mxu0 0
    %223 = vmatprep.subr.bf16.mxu0 0
    %224 = vmatpush2.bf16.msra.mxu0 0
    %225 = vmatprep.mubr.bf16.mxu0 0
    %226 = vmatmul.mubr.bf16.gmra.mxu0 %v191
    %v227 = vpop.f32.mrf.mxu0
    %v228 = vadd.f32 0.0, %v227
    %v229 = vpop.f32.mrf.mxu0
    %v230 = vpop.f32.mrf.mxu0
    %v231 = vpop.f32.mrf.mxu0
    %232 = vdwg.mxu0
    %v233 = vadd.f32 %v176, %v228
    %v234 = vtanh.pop %v233
    %v235 = vmul.f32 %v234, 0.5
    %v236 = vadd.f32 %v235, 0.5
    %238 = vrot.lane.b32.xlu0 %v174, 32
    %v239 = vpop.permute.xlu0 %238
    %v241 = vmul.f32 %v236, %v239
    %243 = vrot.lane.b32.xlu0 %v234, 64
    %v244 = vpop.permute.xlu0 %243
    %v246 = vmul.f32 %v236, %v244
    %248 = vrot.lane.b32.xlu0 %v246, 32
    %v249 = vpop.permute.xlu0 %248
    %v251 = vadd.f32 %v241, %v249
    %v252 = vtanh.pop %v251
    %254 = vrot.lane.b32.xlu0 %v252, 64
    %v255 = vpop.permute.xlu0 %254
    %v257 = vmul.f32 %v236, %v255
    %259 = vrot.lane.b32.xlu0 %v251, 96
    %v260 = vpop.permute.xlu0 %259
    %262 = vst.msk [vmem:[#allocation5] sm:$0xff] %vm163, %v260
    %264 = vrot.lane.b32.xlu0 %v257, 32
    %v265 = vpop.permute.xlu0 %264
    %267 = vst.msk [vmem:[#allocation4] sm:$0xff] %vm163, %v265
    %s268 = scalar_lea.vmem [#allocation3], %s172
    %269 = vst.msk [vmem:[%s268] sm:$0xff] %vm163, %v265
  $region38: #{ins_lstm_dse_forward.1} parent=0 // loop_footer
    %s171 = sadd.s32 1, %s167
  $region39: #{ins_lstm_dse_forward.1} parent=0 // loop_footer_branch
    %166 = sbr.rel target = $region35
  $region40: #{ins_lstm_dse_forward.1} parent=0 // loop_exit
    _
  %v270 = vld [vmem:[#allocation3] sm:$0xff]
  %v271 = vld [vmem:[#allocation3 + $0x8] sm:$0xff]
  %v272 = vld [vmem:[#allocation3 + $0x10] sm:$0xff]
  %v273 = vld [vmem:[#allocation3 + $0x18] sm:$0xff]
  %v274 = vld [vmem:[#allocation3 + $0x20] sm:$0xff]
  %v275 = vld [vmem:[#allocation3 + $0x28] sm:$0xff]
  %v276 = vld [vmem:[#allocation3 + $0x30] sm:$0xff]
  %v277 = vld [vmem:[#allocation3 + $0x38] sm:$0xff]
  %v278 = vpack.c.bf16 %v271, %v270
  %v279 = vpack.c.bf16 %v273, %v272
  %v280 = vpack.c.bf16 %v275, %v274
  %v281 = vpack.c.bf16 %v277, %v276
  %v282 = vld [vmem:[%s4] sm:$0xf]
  %v283 = vld [vmem:[%s4 + $0x4] sm:$0xf]
  %v284 = vld [vmem:[%s4 + $0x8] sm:$0xf]
  %v285 = vld [vmem:[%s4 + $0xc] sm:$0xf]
  %v286 = vld [vmem:[%s6] sm:$0x1]
  %v288 = vlaneseq
  %v289 = vshrl.u32 %v288, 7
  %v290 = vsub.s32 0, %v289
  %v291 = vrot.slane %v286, %v290
  %v297 = vunpack.c.l.b16 %v282
  %v298 = vunpack.c.l.b16 %v283
  %v299 = vunpack.c.l.b16 %v284
  %v300 = vunpack.c.l.b16 %v285
  %v301 = vpack.c.b16 %v298, %v297
  %v302 = vpack.c.b16 %v300, %v299
  %v306 = vsel %vm163, %v278, 0
  %v309 = vsel %vm163, %v279, 0
  %v312 = vsel %vm163, %v280, 0
  %v315 = vsel %vm163, %v281, 0
  %317 = vmatprep.subr.bf16.mxu0 0
  %318 = vmatpush1.bf16.msra.mxu0 0
  %319 = vmatprep.subr.bf16.mxu0 0
  %320 = vmatpush1.bf16.msra.mxu0 0
  %321 = vmatprep.subr.bf16.mxu0 0
  %322 = vmatpush1.bf16.msra.mxu0 0
  %323 = vmatprep.subr.bf16.mxu0 0
  %324 = vmatpush1.bf16.msra.mxu0 0
  %325 = vmatprep.subr.bf16.mxu0 0
  %326 = vmatpush1.bf16.msra.mxu0 0
  %327 = vmatprep.subr.bf16.mxu0 0
  %328 = vmatpush1.bf16.msra.mxu0 0
  %329 = vmatprep.subr.bf16.mxu0 0
  %330 = vmatpush1.bf16.msra.mxu0 %v302
  %331 = vmatprep.subr.bf16.mxu0 0
  %332 = vmatpush1.bf16.msra.mxu0 %v301
  %333 = vmatprep.subr.bf16.mxu0 0
  %334 = vmatpush2.bf16.msra.mxu0 0
  %335 = vmatprep.subr.bf16.mxu0 0
  %336 = vmatpush2.bf16.msra.mxu0 0
  %337 = vmatprep.subr.bf16.mxu0 0
  %338 = vmatpush2.bf16.msra.mxu0 0
  %339 = vmatprep.subr.bf16.mxu0 0
  %340 = vmatpush2.bf16.msra.mxu0 0
  %341 = vmatprep.subr.bf16.mxu0 0
  %342 = vmatpush2.bf16.msra.mxu0 0
  %343 = vmatprep.subr.bf16.mxu0 0
  %344 = vmatpush2.bf16.msra.mxu0 0
  %345 = vmatprep.subr.bf16.mxu0 0
  %346 = vmatpush2.bf16.msra.mxu0 0
  %347 = vmatprep.subr.bf16.mxu0 0
  %348 = vmatpush2.bf16.msra.mxu0 0
  %349 = vmatprep.mubr.bf16.mxu0 0
  %350 = vmatmul.mubr.bf16.gmra.mxu0 %v306
  %v351 = vpop.f32.mrf.mxu0
  %v352 = vadd.f32 %v291, %v351
  %v353 = vpop.f32.mrf.mxu0
  %v354 = vpop.f32.mrf.mxu0
  %v355 = vadd.f32 %v291, %v354
  %v356 = vpop.f32.mrf.mxu0
  %357 = vmatprep.mubr.bf16.mxu0 0
  %358 = vmatmul.mubr.bf16.gmra.mxu0 %v309
  %v359 = vpop.f32.mrf.mxu0
  %v360 = vadd.f32 %v291, %v359
  %v361 = vpop.f32.mrf.mxu0
  %v362 = vpop.f32.mrf.mxu0
  %v363 = vadd.f32 %v291, %v362
  %v364 = vpop.f32.mrf.mxu0
  %365 = vmatprep.mubr.bf16.mxu0 0
  %366 = vmatmul.mubr.bf16.gmra.mxu0 %v312
  %v367 = vpop.f32.mrf.mxu0
  %v368 = vadd.f32 %v291, %v367
  %v369 = vpop.f32.mrf.mxu0
  %v370 = vpop.f32.mrf.mxu0
  %v371 = vadd.f32 %v291, %v370
  %v372 = vpop.f32.mrf.mxu0
  %373 = vmatprep.mubr.bf16.mxu0 0
  %374 = vmatmul.mubr.bf16.gmra.mxu0 %v315
  %v375 = vpop.f32.mrf.mxu0
  %v376 = vadd.f32 %v291, %v375
  %v377 = vpop.f32.mrf.mxu0
  %v378 = vpop.f32.mrf.mxu0
  %v379 = vadd.f32 %v291, %v378
  %v380 = vpop.f32.mrf.mxu0
  %381 = vdwg.mxu0
  %382 = vst [vmem:[#allocation2] sm:$0xff] %v352
  %383 = vst [vmem:[#allocation2 + $0x8] sm:$0xff] %v355
  %384 = vst [vmem:[#allocation2 + $0x10] sm:$0xff] %v360
  %385 = vst [vmem:[#allocation2 + $0x18] sm:$0xff] %v363
  %386 = vst [vmem:[#allocation2 + $0x20] sm:$0xff] %v368
  %387 = vst [vmem:[#allocation2 + $0x28] sm:$0xff] %v371
  %388 = vst [vmem:[#allocation2 + $0x30] sm:$0xff] %v376
  %389 = vst [vmem:[#allocation2 + $0x38] sm:$0xff] %v379
  %v390 = vld [vmem:[%s5] sm:$0xf]
  %v391 = vld [vmem:[%s5 + $0x4] sm:$0xf]
  %v392 = vld [vmem:[%s5 + $0x8] sm:$0xf]
  %v393 = vld [vmem:[%s5 + $0xc] sm:$0xf]
  %394 = vst.msk [vmem:[#allocation4] sm:$0xff] %vm163, 0.0
  %395 = vst.msk [vmem:[#allocation5] sm:$0xff] %vm163, 0.0
  loop: start=0, step=1, limit=8
  $region41: #{ins_lstm_dse_forward.1} parent=0 // loop_pre_header
    _
  $region42: #{ins_lstm_dse_forward.1} parent=0 // loop_header
    %s397 = sphi 0, %s401
    %p398 = scmp.ge.s32.totalorder %s397, 8
  $region43: #{ins_lstm_dse_forward.1} parent=0 // loop_header_branch
    %400 = sbr.rel (%p398) target = $region47
  $region44: #{ins_lstm_dse_forward.1} parent=0 // loop_body
    %s402 = smul.u32 %s397, 8
    %v403 = vld [vmem:[#allocation4] sm:$0xff]
    %v404 = vld [vmem:[#allocation5] sm:$0xff]
    %s405 = scalar_lea.vmem [#allocation2], %s402
    %v406 = vld [vmem:[%s405] sm:$0xff]
    %v407 = vpack.c.bf16 %v403, %v403
    %v412 = vunpack.c.l.b16 %v390
    %v413 = vunpack.c.l.b16 %v391
    %v414 = vunpack.c.l.b16 %v392
    %v415 = vunpack.c.l.b16 %v393
    %v416 = vpack.c.b16 %v413, %v412
    %v417 = vpack.c.b16 %v415, %v414
    %v421 = vsel %vm163, %v407, 0
    %423 = vmatprep.subr.bf16.mxu0 0
    %424 = vmatpush1.bf16.msra.mxu0 0
    %425 = vmatprep.subr.bf16.mxu0 0
    %426 = vmatpush1.bf16.msra.mxu0 0
    %427 = vmatprep.subr.bf16.mxu0 0
    %428 = vmatpush1.bf16.msra.mxu0 0
    %429 = vmatprep.subr.bf16.mxu0 0
    %430 = vmatpush1.bf16.msra.mxu0 0
    %431 = vmatprep.subr.bf16.mxu0 0
    %432 = vmatpush1.bf16.msra.mxu0 0
    %433 = vmatprep.subr.bf16.mxu0 0
    %434 = vmatpush1.bf16.msra.mxu0 0
    %435 = vmatprep.subr.bf16.mxu0 0
    %436 = vmatpush1.bf16.msra.mxu0 %v417
    %437 = vmatprep.subr.bf16.mxu0 0
    %438 = vmatpush1.bf16.msra.mxu0 %v416
    %439 = vmatprep.subr.bf16.mxu0 0
    %440 = vmatpush2.bf16.msra.mxu0 0
    %441 = vmatprep.subr.bf16.mxu0 0
    %442 = vmatpush2.bf16.msra.mxu0 0
    %443 = vmatprep.subr.bf16.mxu0 0
    %444 = vmatpush2.bf16.msra.mxu0 0
    %445 = vmatprep.subr.bf16.mxu0 0
    %446 = vmatpush2.bf16.msra.mxu0 0
    %447 = vmatprep.subr.bf16.mxu0 0
    %448 = vmatpush2.bf16.msra.mxu0 0
    %449 = vmatprep.subr.bf16.mxu0 0
    %450 = vmatpush2.bf16.msra.mxu0 0
    %451 = vmatprep.subr.bf16.mxu0 0
    %452 = vmatpush2.bf16.msra.mxu0 0
    %453 = vmatprep.subr.bf16.mxu0 0
    %454 = vmatpush2.bf16.msra.mxu0 0
    %455 = vmatprep.mubr.bf16.mxu0 0
    %456 = vmatmul.mubr.bf16.gmra.mxu0 %v421
    %v457 = vpop.f32.mrf.mxu0
    %v458 = vadd.f32 0.0, %v457
    %v459 = vpop.f32.mrf.mxu0
    %v460 = vpop.f32.mrf.mxu0
    %v461 = vpop.f32.mrf.mxu0
    %462 = vdwg.mxu0
    %v463 = vadd.f32 %v406, %v458
    %v464 = vtanh.pop %v463
    %v465 = vmul.f32 %v464, 0.5
    %v466 = vadd.f32 %v465, 0.5
    %468 = vrot.lane.b32.xlu0 %v404, 32
    %v469 = vpop.permute.xlu0 %468
    %v471 = vmul.f32 %v466, %v469
    %473 = vrot.lane.b32.xlu0 %v464, 64
    %v474 = vpop.permute.xlu0 %473
    %v476 = vmul.f32 %v466, %v474
    %478 = vrot.lane.b32.xlu0 %v476, 32
    %v479 = vpop.permute.xlu0 %478
    %v481 = vadd.f32 %v471, %v479
    %v482 = vtanh.pop %v481
    %484 = vrot.lane.b32.xlu0 %v482, 64
    %v485 = vpop.permute.xlu0 %484
    %v487 = vmul.f32 %v466, %v485
    %489 = vrot.lane.b32.xlu0 %v481, 96
    %v490 = vpop.permute.xlu0 %489
    %492 = vst.msk [vmem:[#allocation5] sm:$0xff] %vm163, %v490
    %494 = vrot.lane.b32.xlu0 %v487, 32
    %v495 = vpop.permute.xlu0 %494
    %497 = vst.msk [vmem:[#allocation4] sm:$0xff] %vm163, %v495
  $region45: #{ins_lstm_dse_forward.1} parent=0 // loop_footer
    %s401 = sadd.s32 1, %s397
  $region46: #{ins_lstm_dse_forward.1} parent=0 // loop_footer_branch
    %396 = sbr.rel target = $region42
  $region47: #{ins_lstm_dse_forward.1} parent=0 // loop_exit
    _
  %v498 = vld [vmem:[#allocation4] sm:$0xff]
  %v499 = vmax.f32 %v498, 0.0
  %v500 = vpack.c.bf16 %v499, %v499
  %v501 = vld [vmem:[%s7] sm:$0xf]
  %v502 = vld [vmem:[%s7 + $0x4] sm:$0xf]
  %v503 = vld [vmem:[%s7 + $0x8] sm:$0xf]
  %v504 = vld [vmem:[%s7 + $0xc] sm:$0xf]
  %v509 = vunpack.c.l.b16 %v501
  %v510 = vunpack.c.l.b16 %v502
  %v511 = vunpack.c.l.b16 %v503
  %v512 = vunpack.c.l.b16 %v504
  %v513 = vpack.c.b16 %v510, %v509
  %v514 = vpack.c.b16 %v512, %v511
  %v518 = vsel %vm163, %v500, 0
  %520 = vmatprep.subr.bf16.mxu0 0
  %521 = vmatpush1.bf16.msra.mxu0 0
  %522 = vmatprep.subr.bf16.mxu0 0
  %523 = vmatpush1.bf16.msra.mxu0 0
  %524 = vmatprep.subr.bf16.mxu0 0
  %525 = vmatpush1.bf16.msra.mxu0 0
  %526 = vmatprep.subr.bf16.mxu0 0
  %527 = vmatpush1.bf16.msra.mxu0 0
  %528 = vmatprep.subr.bf16.mxu0 0
  %529 = vmatpush1.bf16.msra.mxu0 0
  %530 = vmatprep.subr.bf16.mxu0 0
  %531 = vmatpush1.bf16.msra.mxu0 0
  %532 = vmatprep.subr.bf16.mxu0 0
  %533 = vmatpush1.bf16.msra.mxu0 %v514
  %534 = vmatprep.subr.bf16.mxu0 0
  %535 = vmatpush1.bf16.msra.mxu0 %v513
  %536 = vmatprep.subr.bf16.mxu0 0
  %537 = vmatpush2.bf16.msra.mxu0 0
  %538 = vmatprep.subr.bf16.mxu0 0
  %539 = vmatpush2.bf16.msra.mxu0 0
  %540 = vmatprep.subr.bf16.mxu0 0
  %541 = vmatpush2.bf16.msra.mxu0 0
  %542 = vmatprep.subr.bf16.mxu0 0
  %543 = vmatpush2.bf16.msra.mxu0 0
  %544 = vmatprep.subr.bf16.mxu0 0
  %545 = vmatpush2.bf16.msra.mxu0 0
  %546 = vmatprep.subr.bf16.mxu0 0
  %547 = vmatpush2.bf16.msra.mxu0 0
  %548 = vmatprep.subr.bf16.mxu0 0
  %549 = vmatpush2.bf16.msra.mxu0 0
  %550 = vmatprep.subr.bf16.mxu0 0
  %551 = vmatpush2.bf16.msra.mxu0 0
  %552 = vmatprep.mubr.bf16.mxu0 0
  %553 = vmatmul.mubr.bf16.gmra.mxu0 %v518
  %v554 = vpop.f32.mrf.mxu0
  %v555 = vadd.f32 0.0, %v554
  %v556 = vpop.f32.mrf.mxu0
  %v557 = vpop.f32.mrf.mxu0
  %v558 = vpop.f32.mrf.mxu0
  %559 = vdwg.mxu0
  %560 = vst [vmem:[%s8] sm:$0xff] %v555
  // Predicated region
  $region48: #{ins_lstm_dse_forward.1} parent=0 // pred_check
    _
  $region49: #{ins_lstm_dse_forward.1} parent=0 // pred_check_branch
    %562 = sbr.rel (0) target = $region51
  $region50: #{ins_lstm_dse_forward.1} parent=0 // pred_region
    _
  $region51: #{ins_lstm_dse_forward.1} parent=0 // pred_fallthru
    _
  // Predicated region
  $region52: #{ins_lstm_dse_forward.1} parent=0 // pred_check
    _
  $region53: #{ins_lstm_dse_forward.1} parent=0 // pred_check_branch
    %564 = sbr.rel (0) target = $region55
  $region54: #{ins_lstm_dse_forward.1} parent=0 // pred_region
    _
  $region55: #{ins_lstm_dse_forward.1} parent=0 // pred_fallthru
    _

</llo_original>
